<compile_context>
chip_gen: v7x
topology: tpu7x:2x2x1
jax: 0.10.0
libtpu: 0.0.40
codegen_flags: <defaults>
</compile_context>

<pallas_src>
import jax
import jax.numpy as jnp
from jax.experimental import pallas as pl
from jax.experimental.pallas import tpu as pltpu

_LANE = 128
_SUBLANE = 8
# Safe on every generation (v7x has 64 MiB VMEM per TensorCore).  On v5e/v6e
# (128 MiB VMEM) these can be raised to ~100 MiB to keep larger W resident.
_VMEM_LIMIT = 48 * 1024 * 1024
_VMEM_BUDGET = 36 * 1024 * 1024


def _round_up(a, b):
    return ((a + b - 1) // b) * b


# ----------------------------- kernels --------------------------------------


def _resident_kernel(x_ref, w_ref, b_ref, o_ref):
    """One (tm, Hp) output row-tile; the full bf16 W^T and bias are VMEM-resident.

    x_ref: (tm, Hp) f32   -- single x stream: MXU operand + residual
    w_ref: (Hp, Hp) bf16  -- W^T, (in, out) layout, constant block index
    b_ref: (1,  Hp) f32
    o_ref: (tm, Hp)
    """
    y = jnp.dot(
        x_ref[...].astype(jnp.bfloat16),
        w_ref[...],
        preferred_element_type=jnp.float32,
    )
    # Bias + skip connection in f32, cast once on store.
    o_ref[...] = (y + b_ref[...] + x_ref[...]).astype(o_ref.dtype)


def _tiled_kernel(x_ref, w_ref, b_ref, o_ref):
    """Large-H fallback: (tm, tn) output tile, K tiled along grid axis 2 (tn == tk).

    x_ref: (tm, t) f32   -- k-th column tile of x (MXU operand; residual at k == j)
    w_ref: (t,  t) bf16  -- W^T tile (k, j)
    b_ref: (1,  t) f32
    o_ref: (tm, t) f32   -- resident across K: used directly as the accumulator
    """
    j = pl.program_id(1)
    k = pl.program_id(2)

    @pl.when(k == 0)
    def _():
        # Initialize the resident output block with the bias (no epilogue needed).
        o_ref[...] = jnp.broadcast_to(b_ref[...], o_ref.shape)

    o_ref[...] += jnp.dot(
        x_ref[...].astype(jnp.bfloat16),
        w_ref[...],
        preferred_element_type=jnp.float32,
    )

    # Residual folded out of the matmul x stream: with tn == tk the k-th x tile
    # is exactly the residual tile of output column block j when k == j.
    @pl.when(k == j)
    def _():
        o_ref[...] += x_ref[...]


# ----------------------------- tile planning --------------------------------


def _plan_resident(M, Hp):
    """Row-tile plan for the resident-W path; None if W does not fit the budget."""
    w_bytes = 2 * (2 * Hp * Hp)                 # bf16 W^T, assume double-buffered
    row_bytes = 2 * (4 * Hp) + 2 * (4 * Hp)     # f32 x tile + f32 out tile (x2 buffers)
    spare = _VMEM_BUDGET - w_bytes - 2 * 4 * Hp
    if spare <= 0:
        return None
    max_tm = (spare // row_bytes) // _SUBLANE * _SUBLANE
    if max_tm < _SUBLANE:
        return None
    if max_tm < 64 and M > 4 * max_tm:
        return None  # VMEM-squeezed with large M: the tiled path is better.
    tm_cap = min(512, max_tm)
    # >= 2 row tiles whenever possible so both v7x TensorCores get work, and
    # tm nearly divides M so padding waste stays < one sublane row per tile.
    n_m = max(pl.cdiv(M, tm_cap), 2 if M >= 2 * _SUBLANE else 1)
    tm = min(_round_up(pl.cdiv(M, n_m), _SUBLANE), max_tm)
    return tm, pl.cdiv(M, tm)


def _plan_tiled(M, Hp):
    """(tm, tnk) for the tiled fallback; tn == tk enables the residual fold."""
    tnk = _LANE
    for t in (1024, 512, 256):
        if Hp % t == 0:
            tnk = t
            break
    tm = _SUBLANE
    for tm_cap in (1024, 768, 512, 384, 256, 128, 64, 32, 16, 8):
        n_m = pl.cdiv(M, tm_cap)
        cand = _round_up(pl.cdiv(M, n_m), _SUBLANE)
        vmem = (2 * cand * tnk * 4      # x tiles (f32)
                + 2 * tnk * tnk * 2     # W^T tiles (bf16)
                + 2 * cand * tnk * 4    # output tiles (f32, resident accumulator)
                + 2 * tnk * 4)          # bias
        if vmem <= _VMEM_BUDGET:
            tm = cand
            break
    return tm, tnk


# ----------------------------- wrappers --------------------------------------


def skip_connection_2d(x2d, w, b, *, force_tiled=False):
    """out = x2d @ w.T + b + x2d;  w is in PyTorch (out_features, in_features) layout."""
    M, H = x2d.shape
    out_dtype = x2d.dtype
    Hp = _round_up(H, _LANE)

    # One-time parameter prep: zero-pad (inert), (in, out) layout, bf16 MXU operand.
    wt = jnp.pad(w, ((0, Hp - H), (0, Hp - H))).T.astype(jnp.bfloat16)   # (Hp, Hp)
    bp = jnp.pad(b, (0, Hp - H)).astype(jnp.float32).reshape(1, Hp)

    plan = None if force_tiled else _plan_resident(M, Hp)

    if plan is not None:
        # ---- Resident-W path: W^T + bias live in VMEM, only x row-tiles stream.
        tm, n_m = plan
        Mp = tm * n_m
        xp = x2d if (Mp == M and Hp == H) else jnp.pad(
            x2d, ((0, Mp - M), (0, Hp - H)))
        cost = pl.CostEstimate(
            flops=2 * Mp * Hp * Hp,
            transcendentals=0,
            bytes_accessed=Mp * Hp * 4 + Hp * Hp * 2 + Hp * 4 + Mp * Hp * 4,
        )
        out = pl.pallas_call(
            _resident_kernel,
            out_shape=jax.ShapeDtypeStruct((Mp, Hp), out_dtype),
            grid_spec=pltpu.PrefetchScalarGridSpec(
                num_scalar_prefetch=0,
                grid=(n_m,),
                in_specs=[
                    pl.BlockSpec((tm, Hp), lambda i: (i, 0)),   # x (f32, single stream)
                    pl.BlockSpec((Hp, Hp), lambda i: (0, 0)),   # W^T bf16, VMEM-resident
                    pl.BlockSpec((1, Hp), lambda i: (0, 0)),    # bias, VMEM-resident
                ],
                out_specs=pl.BlockSpec((tm, Hp), lambda i: (i, 0)),
            ),
            compiler_params=pltpu.CompilerParams(
                dimension_semantics=("parallel",),
                vmem_limit_bytes=_VMEM_LIMIT,
            ),
            cost_estimate=cost,
        )(xp, wt, bp)
        return out[:M, :H]

    # ---- Large-H fallback: tiled (M, N, K) grid, K innermost, residual folded
    # from the x matmul stream at k == j, f32 accumulation in the output block.
    tm, tnk = _plan_tiled(M, Hp)
    n_m = pl.cdiv(M, tm)
    Mp = tm * n_m
    xp = x2d if (Mp == M and Hp == H) else jnp.pad(x2d, ((0, Mp - M), (0, Hp - H)))
    gj = Hp // tnk
    cost = pl.CostEstimate(
        flops=2 * Mp * Hp * Hp,
        transcendentals=0,
        # x is re-read once per N tile; W^T once per M tile; out written once.
        bytes_accessed=gj * Mp * Hp * 4 + n_m * Hp * Hp * 2 + Hp * 4 + Mp * Hp * 4,
    )
    out = pl.pallas_call(
        _tiled_kernel,
        out_shape=jax.ShapeDtypeStruct((Mp, Hp), jnp.float32),
        grid_spec=pltpu.PrefetchScalarGridSpec(
            num_scalar_prefetch=0,
            grid=(n_m, gj, gj),                                 # tn == tk
            in_specs=[
                pl.BlockSpec((tm, tnk), lambda i, j, k: (i, k)),   # x (f32)
                pl.BlockSpec((tnk, tnk), lambda i, j, k: (k, j)),  # W^T (bf16)
                pl.BlockSpec((1, tnk), lambda i, j, k: (0, j)),    # bias
            ],
            out_specs=pl.BlockSpec((tm, tnk), lambda i, j, k: (i, j)),
        ),
        compiler_params=pltpu.CompilerParams(
            dimension_semantics=("parallel", "parallel", "arbitrary"),
            vmem_limit_bytes=_VMEM_LIMIT,
        ),
        cost_estimate=cost,
    )(xp, wt, bp)
    out = out[:M, :H]
    return out if out.dtype == out_dtype else out.astype(out_dtype)


def skip_connection_module(x, w_torch_layout, b):
    """Mirrors SkipConnection(nn.Linear(H, H)).forward(x) with fan_in_layer=None.

    x: (batch, seq, hidden)
    w_torch_layout: (out_features, in_features)  -- PyTorch nn.Linear layout
    b: (out_features,)
    """
    # TODO(synk): the fan_in_layer (non-None) branch and arbitrary inner `layer`
    # modules are not lowered; this kernel covers the residual-around-Linear case.
    B, S, H = x.shape
    out2d = skip_connection_2d(x.reshape(B * S, H), w_torch_layout, b)
    return out2d.reshape(B, S, H)


if __name__ == "__main__":
    batch, seq, hidden = 2, 8, 32

    key = jax.random.PRNGKey(0)
    kx, kw, kb = jax.random.split(key, 3)

    # Deterministic synthetic parameters (PyTorch nn.Linear shapes).
    x = jax.random.normal(kx, (batch, seq, hidden), dtype=jnp.float32)
    w = jax.random.normal(kw, (hidden, hidden), dtype=jnp.float32) * 0.05  # (out, in)
    b = jax.random.normal(kb, (hidden,), dtype=jnp.float32) * 0.05

    out = jax.block_until_ready(skip_connection_module(x, w, b))
    assert out.shape == (batch, seq, hidden)

    # Reference 1: same arithmetic as the kernel (bf16 MXU operands, f32
    # accumulation + f32 bias/residual) -> tight tolerance.
    ref_bf16 = (
        jnp.dot(
            x.reshape(-1, hidden).astype(jnp.bfloat16),
            w.astype(jnp.bfloat16).T,
            preferred_element_type=jnp.float32,
        ).reshape(batch, seq, hidden)
        + b
        + x
    )
    # Reference 2: full-f32 SkipConnection(Linear).forward -> loose tolerance
    # (bf16 operand rounding only; accumulation and residual stay f32).
    ref_f32 = x @ w.T + b + x

    assert jnp.allclose(out, ref_bf16, atol=2e-3, rtol=2e-3)
    assert jnp.allclose(out, ref_f32, atol=5e-2, rtol=5e-2)

    # Also exercise the large-H tiled fallback path (forced at a small shape).
    h2, m2 = 384, 40
    x2 = jax.random.normal(kx, (m2, h2), dtype=jnp.float32)
    w2 = jax.random.normal(kw, (h2, h2), dtype=jnp.float32) * 0.05
    b2 = jax.random.normal(kb, (h2,), dtype=jnp.float32) * 0.05
    out2 = jax.block_until_ready(skip_connection_2d(x2, w2, b2, force_tiled=True))
    ref2 = x2 @ w2.T + b2 + x2
    assert out2.shape == (m2, h2)
    assert jnp.allclose(out2, ref2, atol=5e-2, rtol=5e-2)

    print("KERNEL_OK")
</pallas_src>

<mosaic_0001>
module attributes {stable_mosaic.version = 11 : i64} {
  func.func @_resident_kernel(%arg0: i32, %arg1: memref<8x128xf32, #tpu.memory_space<vmem>>, %arg2: memref<128x128xbf16, #tpu.memory_space<vmem>>, %arg3: memref<1x128xf32, #tpu.memory_space<vmem>>, %arg4: memref<8x128xf32, #tpu.memory_space<vmem>>) attributes {dimension_semantics = [#tpu.dimension_semantics<parallel>], iteration_bounds = array<i64: 2>, scalar_prefetch = 0 : i64, scratch_operands = 0 : i64, tpu.core_type = #tpu.core_type<tc>, window_params = [{transform_indices = @transform_0, window_bounds = array<i64: 8, 128>}, {pipeline_mode = #tpu.pipeline_mode<synchronous>, transform_indices = @transform_1, window_bounds = array<i64: 128, 128>}, {pipeline_mode = #tpu.pipeline_mode<synchronous>, transform_indices = @transform_2, window_bounds = array<i64: 1, 128>}, {transform_indices = @transform_3, window_bounds = array<i64: 8, 128>}]} {
    %c0 = arith.constant 0 : index
    %c0_0 = arith.constant 0 : index
    %0 = vector.load %arg1[%c0, %c0_0] : memref<8x128xf32, #tpu.memory_space<vmem>>, vector<8x128xf32>
    %1 = arith.truncf %0 : vector<8x128xf32> to vector<8x128xbf16>
    %c0_1 = arith.constant 0 : index
    %c0_2 = arith.constant 0 : index
    %2 = vector.load %arg2[%c0_1, %c0_2] : memref<128x128xbf16, #tpu.memory_space<vmem>>, vector<128x128xbf16>
    %cst = arith.constant dense<0.000000e+00> : vector<8x128xf32>
    %3 = tpu.matmul %1, %2, %cst {dimension_numbers = #tpu.dot_dimension_numbers<[1], [0], [0], [1], [0, 0, 1, 1], [], []>} : vector<8x128xbf16>, vector<128x128xbf16>, vector<8x128xf32> -> vector<8x128xf32>
    %c0_3 = arith.constant 0 : index
    %c0_4 = arith.constant 0 : index
    %4 = vector.load %arg3[%c0_3, %c0_4] : memref<1x128xf32, #tpu.memory_space<vmem>>, vector<1x128xf32>
    %5 = vector.broadcast %4 : vector<1x128xf32> to vector<8x128xf32>
    %6 = arith.addf %3, %5 : vector<8x128xf32>
    %c0_5 = arith.constant 0 : index
    %c0_6 = arith.constant 0 : index
    %7 = vector.load %arg1[%c0_5, %c0_6] : memref<8x128xf32, #tpu.memory_space<vmem>>, vector<8x128xf32>
    %8 = arith.addf %6, %7 : vector<8x128xf32>
    %c0_7 = arith.constant 0 : index
    %c0_8 = arith.constant 0 : index
    %9 = vector.load %arg4[%c0_7, %c0_8] : memref<8x128xf32, #tpu.memory_space<vmem>>, vector<8x128xf32>
    tpu.vector_store %arg4[%c0_7, %c0_8], %8 {strides = array<i32>} : memref<8x128xf32, #tpu.memory_space<vmem>>, vector<8x128xf32>,
    return
  }
  func.func @transform_0(%arg0: i32) -> (i32, i32) {
    %c0_i32 = arith.constant 0 : i32
    %c0_i32_0 = arith.constant 0 : i32
    return %arg0, %c0_i32 : i32, i32
  }
  func.func @transform_1(%arg0: i32) -> (i32, i32) {
    %c0_i32 = arith.constant 0 : i32
    %c0_i32_0 = arith.constant 0 : i32
    %c0_i32_1 = arith.constant 0 : i32
    return %c0_i32, %c0_i32_0 : i32, i32
  }
  func.func @transform_2(%arg0: i32) -> (i32, i32) {
    %c0_i32 = arith.constant 0 : i32
    %c0_i32_0 = arith.constant 0 : i32
    %c0_i32_1 = arith.constant 0 : i32
    return %c0_i32, %c0_i32_0 : i32, i32
  }
  func.func @transform_3(%arg0: i32) -> (i32, i32) {
    %c0_i32 = arith.constant 0 : i32
    %c0_i32_0 = arith.constant 0 : i32
    return %arg0, %c0_i32 : i32, i32
  }
}

</mosaic_0001>

<llo_original>
// kernel: tpu_custom_call.1
$region0: #{tpu_custom_call.1}
  #allocation0 [shape = 'u32[]', space=smem, size = 0x4, offset = 0x4, fixed_abs, tag = 'smem constant byte address 0x4 - core index']
  #allocation1 [shape = 'u32[144,128]{1,0:T(1,128)}', space=vmem, size = 0x12000, scoped, tag = 'internal scratch']
  %s0 = inlined_call_operand.hbm [shape: f32[16,128], index: 0, kind: input, shape index: {}]
  %s1 = inlined_call_operand.hbm [shape: bf16[128,128], index: 1, kind: input, shape index: {}]
  %s2 = inlined_call_operand.vmem [shape: f32[1,128], index: 2, kind: input, shape index: {}]
  %s3 = inlined_call_operand.hbm [shape: f32[16,128], index: 3, kind: output, shape index: {}]
  %s4 = sld [smem:[#allocation0]]
  $region53: #{tpu_custom_call.1} parent=0
    _
  %s6 = ssub.s32 1, %s4
  %s7 = scalar_select 0, %s6, %s4
  $region1: #{tpu_custom_call.1} parent=0
    #allocation2 [shape = 'u8[8192]{0}', space=vmem, size = 0x2000, scoped, tag = 'input window, operand 0']
    #allocation3 [shape = 's32[2]{0}', space=sflag, size = 0x8, scoped, tag = 'scoped memory for tpu_custom_call.1']
    #allocation4 [shape = 's32[2]{0}', space=sflag, size = 0x8, scoped, tag = 'scoped memory for tpu_custom_call.1']
    #allocation5 [shape = 'u8[32768]{0}', space=vmem, size = 0x8000, scoped, tag = 'input window, operand 1, single buffered']
    #allocation6 [shape = 's32[1]{0}', space=sflag, size = 0x4, scoped, tag = 'scoped memory for tpu_custom_call.1']
    #allocation7 [shape = 'u8[8192]{0}', space=vmem, size = 0x2000, scoped, tag = 'output window, operand 0']
    %8 = vsyncpa [#allocation3], 0
    %s9 = scalar_lea.sflag [#allocation3], 1
    %10 = vsyncpa %s9, 0
    %11 = vsyncpa [#allocation6], 0
    %12 = vsyncpa [#allocation4], 0
    %s13 = scalar_lea.sflag [#allocation4], 1
    %14 = vsyncpa %s13, 0
    loop: start=0, step=1, limit=4
    $region2: #{tpu_custom_call.1} parent=1 // loop_pre_header
      _
    $region3: #{tpu_custom_call.1} parent=1 // loop_header
      %s16 = sphi 0, %s20
      %p17 = scmp.ge.s32.totalorder %s16, 4
      %s26 = sphi 0, %s28
      %s29 = sphi 0, %s26
      %s30 = sphi 0, %s29
      %s46 = sphi 0, %s30
      %s50 = sphi 0, %s50
      %s52 = sphi 0, %s50
      %s53 = sphi 0, %s52
      %s67 = sphi 0, %s53
      %s71 = sphi 0, %s71
      %s73 = sphi 0, %s71
      %s74 = sphi 0, %s73
      %s88 = sphi 0, %s74
      %s94 = sphi 0, %s96
      %s97 = sphi 0, %s94
      %s98 = sphi 0, %s97
      %s114 = sphi 0, %s98
    $region4: #{tpu_custom_call.1} parent=1 // loop_header_branch
      %19 = sbr.rel (%p17) target = $region8
    $region5: #{tpu_custom_call.1} parent=1 // loop_body
      %s21 = ssub.s32 %s16, 1
      %s22 = ssub.s32 %s16, 2
      %s23 = sadd.s32 %s16, 1
      %s24 = ssub.s32 %s16, %s23
      %p25 = scmp.eq.s32.totalorder %s24, 0
      %s27 = sadd.s32 %s26, 1
      %s28 = scalar_select %p25, %s26, %s27
      %p31 = pneg %p25
      %p32 = scmp.eq.s32.totalorder %s16, 1
      %p33 = por %p31, %p32
      %p34 = scmp.ne.s32.totalorder %s26, %s29
      %p35 = scmp.eq.s32.totalorder %s16, 0
      %p36 = por %p34, %p35
      %p37 = scmp.ne.s32.totalorder %s26, %s29
      %p38 = scmp.eq.s32.totalorder %s21, 1
      %p39 = por %p37, %p38
      %p40 = scmp.ne.s32.totalorder %s29, %s30
      %p41 = scmp.eq.s32.totalorder %s21, 0
      %p42 = por %p40, %p41
      %p43 = scmp.ne.s32.totalorder %s29, %s30
      %p44 = scmp.eq.s32.totalorder %s22, 1
      %p45 = por %p43, %p44
      %p47 = scmp.ne.s32.totalorder %s30, %s46
      %p48 = scmp.eq.s32.totalorder %s22, 0
      %p49 = por %p47, %p48
      %s51 = sadd.s32 %s50, 1
      %p54 = scmp.eq.s32.totalorder %s16, 1
      %p55 = scmp.ne.s32.totalorder %s50, %s52
      %p56 = scmp.eq.s32.totalorder %s16, 0
      %p57 = por %p55, %p56
      %p58 = scmp.ne.s32.totalorder %s50, %s52
      %p59 = scmp.eq.s32.totalorder %s21, 1
      %p60 = por %p58, %p59
      %p61 = scmp.ne.s32.totalorder %s52, %s53
      %p62 = scmp.eq.s32.totalorder %s21, 0
      %p63 = por %p61, %p62
      %p64 = scmp.ne.s32.totalorder %s52, %s53
      %p65 = scmp.eq.s32.totalorder %s22, 1
      %p66 = por %p64, %p65
      %p68 = scmp.ne.s32.totalorder %s53, %s67
      %p69 = scmp.eq.s32.totalorder %s22, 0
      %p70 = por %p68, %p69
      %s72 = sadd.s32 %s71, 1
      %p75 = scmp.eq.s32.totalorder %s16, 1
      %p76 = scmp.ne.s32.totalorder %s71, %s73
      %p77 = scmp.eq.s32.totalorder %s16, 0
      %p78 = por %p76, %p77
      %p79 = scmp.ne.s32.totalorder %s71, %s73
      %p80 = scmp.eq.s32.totalorder %s21, 1
      %p81 = por %p79, %p80
      %p82 = scmp.ne.s32.totalorder %s73, %s74
      %p83 = scmp.eq.s32.totalorder %s21, 0
      %p84 = por %p82, %p83
      %p85 = scmp.ne.s32.totalorder %s73, %s74
      %p86 = scmp.eq.s32.totalorder %s22, 1
      %p87 = por %p85, %p86
      %p89 = scmp.ne.s32.totalorder %s74, %s88
      %p90 = scmp.eq.s32.totalorder %s22, 0
      %p91 = por %p89, %p90
      %s92 = ssub.s32 %s16, %s23
      %p93 = scmp.eq.s32.totalorder %s92, 0
      %s95 = sadd.s32 %s94, 1
      %s96 = scalar_select %p93, %s94, %s95
      %p99 = pneg %p93
      %p100 = scmp.eq.s32.totalorder %s16, 1
      %p101 = por %p99, %p100
      %p102 = scmp.ne.s32.totalorder %s94, %s97
      %p103 = scmp.eq.s32.totalorder %s16, 0
      %p104 = por %p102, %p103
      %p105 = scmp.ne.s32.totalorder %s94, %s97
      %p106 = scmp.eq.s32.totalorder %s21, 1
      %p107 = por %p105, %p106
      %p108 = scmp.ne.s32.totalorder %s97, %s98
      %p109 = scmp.eq.s32.totalorder %s21, 0
      %p110 = por %p108, %p109
      %p111 = scmp.ne.s32.totalorder %s97, %s98
      %p112 = scmp.eq.s32.totalorder %s22, 1
      %p113 = por %p111, %p112
      %p115 = scmp.ne.s32.totalorder %s98, %s114
      %p116 = scmp.eq.s32.totalorder %s22, 0
      %p117 = por %p115, %p116
      %p118 = scmp.le.s32.totalorder 1, %s16
      %p119 = scmp.lt.s32.totalorder %s16, 3
      %p120 = pnand %p118, %p119
      %p121 = pneg %p120
      // Predicated region
      $region9: #{tpu_custom_call.1} parent=5 // pred_check
        _
      $region10: #{tpu_custom_call.1} parent=5 // pred_check_branch
        %123 = sbr.rel (%p120) target = $region12
      $region11: #{tpu_custom_call.1} parent=5 // pred_region
        %s124 = ssub.s32 %s16, 1
        // Predicated region
        $region13: #{tpu_custom_call.1} parent=11 // pred_check
          %p125 = pneg %p63
        $region14: #{tpu_custom_call.1} parent=11 // pred_check_branch
          %127 = sbr.rel (%p125) target = $region16
        $region15: #{tpu_custom_call.1} parent=11 // pred_region
          %s129 = ssub.s32 1024, 1024
          %130 = vsyncadd [#allocation6], %s129
          %s131 = sshll.u32 [#allocation5], 4
          %s132 = int_to_ptr.vmem [resolvable:$true] %s131
          %137 = dma.hbm_to_vmem [thread:$0]  %s1, 1024, %s132, [#allocation6], 64, 64, 4
        $region16: #{tpu_custom_call.1} parent=11 // pred_fallthru
          _
        // Predicated region
        $region17: #{tpu_custom_call.1} parent=11 // pred_check
          %p138 = pneg %p84
        $region18: #{tpu_custom_call.1} parent=11 // pred_check_branch
          %140 = sbr.rel (%p138) target = $region20
        $region19: #{tpu_custom_call.1} parent=11 // pred_region
          _
        $region20: #{tpu_custom_call.1} parent=11 // pred_fallthru
          _
      $region12: #{tpu_custom_call.1} parent=5 // pred_fallthru
        _
      %p141 = scmp.lt.s32.totalorder %s16, 2
      // Predicated region
      $region21: #{tpu_custom_call.1} parent=5 // pred_check
        %p142 = pneg %p141
      $region22: #{tpu_custom_call.1} parent=5 // pred_check_branch
        %144 = sbr.rel (%p142) target = $region24
      $region23: #{tpu_custom_call.1} parent=5 // pred_region
        // Predicated region
        $region25: #{tpu_custom_call.1} parent=23 // pred_check
          %p145 = pneg %p36
        $region26: #{tpu_custom_call.1} parent=23 // pred_check_branch
          %147 = sbr.rel (%p145) target = $region28
        $region27: #{tpu_custom_call.1} parent=23 // pred_region
          %s148 = sand.u32 %s26, 1
          %s149 = scalar_lea.sflag [#allocation3], %s148
          %s150 = sand.u32 %s26, 1
          %s151 = smul.addr %s150, 8
          %s152 = scalar_lea.vmem [#allocation2], %s151
          %s154 = ssub.s32 128, 128
          %155 = vsyncadd %s149, %s154
          %s156 = smul.addr %s16, 128
          %s157 = scalar_lea.hbm %s0, %s156
          %s159 = sshll.u32 %s152, 4
          %s160 = int_to_ptr.vmem [resolvable:$true] %s159
          %162 = dma.hbm_to_vmem [thread:$0]  %s157, 128, %s160, %s149
        $region28: #{tpu_custom_call.1} parent=23 // pred_fallthru
          _
      $region24: #{tpu_custom_call.1} parent=5 // pred_fallthru
        _
      %p163 = scmp.le.s32.totalorder 1, %s16
      %p164 = scmp.lt.s32.totalorder %s16, 3
      %p165 = pnand %p163, %p164
      %p166 = pneg %p165
      // Predicated region
      $region29: #{tpu_custom_call.1} parent=5 // pred_check
        _
      $region30: #{tpu_custom_call.1} parent=5 // pred_check_branch
        %168 = sbr.rel (%p165) target = $region32
      $region31: #{tpu_custom_call.1} parent=5 // pred_region
        %s169 = ssub.s32 %s16, 1
        %s170 = sand.u32 %s29, 1
        %s171 = scalar_lea.sflag [#allocation3], %s170
        %s172 = sand.u32 %s29, 1
        %s173 = smul.addr %s172, 8
        %s174 = scalar_lea.vmem [#allocation2], %s173
        // Predicated region
        $region33: #{tpu_custom_call.1} parent=31 // pred_check
          %p175 = pneg %p42
        $region34: #{tpu_custom_call.1} parent=31 // pred_check_branch
          %177 = sbr.rel (%p175) target = $region36
        $region35: #{tpu_custom_call.1} parent=31 // pred_region
          %178 = dma.done %s171, 128
        $region36: #{tpu_custom_call.1} parent=31 // pred_fallthru
          _
        // Predicated region
        $region37: #{tpu_custom_call.1} parent=31 // pred_check
          %p179 = pneg %p63
        $region38: #{tpu_custom_call.1} parent=31 // pred_check_branch
          %181 = sbr.rel (%p179) target = $region40
        $region39: #{tpu_custom_call.1} parent=31 // pred_region
          %182 = dma.done [#allocation6], 1024
        $region40: #{tpu_custom_call.1} parent=31 // pred_fallthru
          _
        %s183 = sand.u32 %s29, 1
        %s184 = scalar_lea.sflag [#allocation3], %s183
        %s185 = sand.u32 %s29, 1
        %s186 = smul.addr %s185, 8
        %s187 = scalar_lea.vmem [#allocation2], %s186
        %p188 = pneg %p42
        %p189 = pneg %p39
        %p190 = pneg %p63
        %p191 = pneg %p60
        %p192 = pneg %p84
        %p193 = pneg %p81
        %p194 = pneg %p110
        %p195 = pneg %p107
        %s196 = sand.u32 %s97, 1
        %s197 = scalar_lea.sflag [#allocation4], %s196
        %s198 = sand.u32 %s97, 1
        %s199 = smul.addr %s198, 8
        %s200 = scalar_lea.vmem [#allocation7], %s199
        %v202 = vld [vmem:[%s174] sm:$0xff]
        %v203 = vpack.c.bf16 %v202, %v202
        %v204 = vld [vmem:[#allocation5] sm:$0xf]
        %v205 = vld [vmem:[#allocation5 + $0x4] sm:$0xf]
        %v206 = vld [vmem:[#allocation5 + $0x8] sm:$0xf]
        %v207 = vld [vmem:[#allocation5 + $0xc] sm:$0xf]
        %v208 = vld [vmem:[#allocation5 + $0x10] sm:$0xf]
        %v209 = vld [vmem:[#allocation5 + $0x14] sm:$0xf]
        %v210 = vld [vmem:[#allocation5 + $0x18] sm:$0xf]
        %v211 = vld [vmem:[#allocation5 + $0x1c] sm:$0xf]
        %v212 = vld [vmem:[#allocation5 + $0x20] sm:$0xf]
        %v213 = vld [vmem:[#allocation5 + $0x24] sm:$0xf]
        %v214 = vld [vmem:[#allocation5 + $0x28] sm:$0xf]
        %v215 = vld [vmem:[#allocation5 + $0x2c] sm:$0xf]
        %v216 = vld [vmem:[#allocation5 + $0x30] sm:$0xf]
        %v217 = vld [vmem:[#allocation5 + $0x34] sm:$0xf]
        %v218 = vld [vmem:[#allocation5 + $0x38] sm:$0xf]
        %v219 = vld [vmem:[#allocation5 + $0x3c] sm:$0xf]
        %v220 = vld [vmem:[%s2] sm:$0x1]
        %v222 = vlaneseq
        %v223 = vshrl.u32 %v222, 7
        %v224 = vsub.s32 0, %v223
        %v225 = vrot.slane %v220, %v224
        %v243 = vunpack.c.l.b16 %v204
        %v244 = vunpack.c.l.b16 %v205
        %v245 = vunpack.c.l.b16 %v206
        %v246 = vunpack.c.l.b16 %v207
        %v247 = vunpack.c.l.b16 %v208
        %v248 = vunpack.c.l.b16 %v209
        %v249 = vunpack.c.l.b16 %v210
        %v250 = vunpack.c.l.b16 %v211
        %v251 = vunpack.c.l.b16 %v212
        %v252 = vunpack.c.l.b16 %v213
        %v253 = vunpack.c.l.b16 %v214
        %v254 = vunpack.c.l.b16 %v215
        %v255 = vunpack.c.l.b16 %v216
        %v256 = vunpack.c.l.b16 %v217
        %v257 = vunpack.c.l.b16 %v218
        %v258 = vunpack.c.l.b16 %v219
        %v259 = vpack.c.b16 %v244, %v243
        %v260 = vpack.c.b16 %v246, %v245
        %v261 = vpack.c.b16 %v248, %v247
        %v262 = vpack.c.b16 %v250, %v249
        %v263 = vpack.c.b16 %v252, %v251
        %v264 = vpack.c.b16 %v254, %v253
        %v265 = vpack.c.b16 %v256, %v255
        %v266 = vpack.c.b16 %v258, %v257
        %275 = vmatprep.subr.bf16.mxu0 0
        %276 = vmatpush1.bf16.msra.mxu0 %v259
        %277 = vmatprep.subr.bf16.mxu0 0
        %278 = vmatpush1.bf16.msra.mxu0 %v260
        %279 = vmatprep.subr.bf16.mxu0 0
        %280 = vmatpush1.bf16.msra.mxu0 %v261
        %281 = vmatprep.subr.bf16.mxu0 0
        %282 = vmatpush1.bf16.msra.mxu0 %v262
        %283 = vmatprep.subr.bf16.mxu0 0
        %284 = vmatpush1.bf16.msra.mxu0 %v263
        %285 = vmatprep.subr.bf16.mxu0 0
        %286 = vmatpush1.bf16.msra.mxu0 %v264
        %287 = vmatprep.subr.bf16.mxu0 0
        %288 = vmatpush1.bf16.msra.mxu0 %v265
        %289 = vmatprep.subr.bf16.mxu0 0
        %290 = vmatpush1.bf16.msra.mxu0 %v266
        %291 = vmatprep.subr.bf16.mxu0 0
        %292 = vmatpush1.bf16.msra.mxu0 0
        %293 = vmatprep.subr.bf16.mxu0 0
        %294 = vmatpush1.bf16.msra.mxu0 0
        %295 = vmatprep.subr.bf16.mxu0 0
        %296 = vmatpush1.bf16.msra.mxu0 0
        %297 = vmatprep.subr.bf16.mxu0 0
        %298 = vmatpush1.bf16.msra.mxu0 0
        %299 = vmatprep.subr.bf16.mxu0 0
        %300 = vmatpush1.bf16.msra.mxu0 0
        %301 = vmatprep.subr.bf16.mxu0 0
        %302 = vmatpush1.bf16.msra.mxu0 0
        %303 = vmatprep.subr.bf16.mxu0 0
        %304 = vmatpush1.bf16.msra.mxu0 0
        %305 = vmatprep.subr.bf16.mxu0 0
        %306 = vmatpush1.bf16.msra.mxu0 0
        %307 = vmatprep.mubr.bf16.mxu0 0
        %308 = vmatmul.mubr.bf16.gmra.mrb[0].mxu0 %v203
        %v309 = vpop.f32.mrb[0].mxu0
        %v310 = vadd.f32 %v225, %v309
        %v311 = vpop.f32.mrb[0].mxu0
        %v312 = vpop.f32.mrb[0].mxu0
        %v313 = vpop.f32.mrb[0].mxu0
        %314 = vdwg.mxu0
        %v315 = vadd.f32 %v310, %v202
        %316 = vst [vmem:[%s200] sm:$0xff] %v315
        %s317 = sand.u32 %s97, 1
        %s318 = scalar_lea.sflag [#allocation4], %s317
        %s319 = sand.u32 %s97, 1
        %s320 = smul.addr %s319, 8
        %s321 = scalar_lea.vmem [#allocation7], %s320
        // Predicated region
        $region41: #{tpu_custom_call.1} parent=31 // pred_check
          %p322 = pneg %p107
        $region42: #{tpu_custom_call.1} parent=31 // pred_check_branch
          %324 = sbr.rel (%p322) target = $region44
        $region43: #{tpu_custom_call.1} parent=31 // pred_region
          %s326 = ssub.s32 128, 128
          %327 = vsyncadd %s318, %s326
          %s328 = smul.addr %s21, 128
          %s329 = scalar_lea.hbm %s3, %s328
          %s331 = sshll.u32 %s321, 4
          %s332 = int_to_ptr.vmem [resolvable:$true] %s331
          %334 = dma.vmem_to_hbm [thread:$0]  %s332, 128, %s329, %s318
        $region44: #{tpu_custom_call.1} parent=31 // pred_fallthru
          _
      $region32: #{tpu_custom_call.1} parent=5 // pred_fallthru
        _
      %p335 = scmp.le.s32.totalorder 2, %s16
      // Predicated region
      $region45: #{tpu_custom_call.1} parent=5 // pred_check
        %p336 = pneg %p335
      $region46: #{tpu_custom_call.1} parent=5 // pred_check_branch
        %338 = sbr.rel (%p336) target = $region48
      $region47: #{tpu_custom_call.1} parent=5 // pred_region
        %s339 = ssub.s32 %s16, 2
        // Predicated region
        $region49: #{tpu_custom_call.1} parent=47 // pred_check
          %p340 = pneg %p113
        $region50: #{tpu_custom_call.1} parent=47 // pred_check_branch
          %342 = sbr.rel (%p340) target = $region52
        $region51: #{tpu_custom_call.1} parent=47 // pred_region
          %s343 = sand.u32 %s98, 1
          %s344 = scalar_lea.sflag [#allocation4], %s343
          %s345 = sand.u32 %s98, 1
          %s346 = smul.addr %s345, 8
          %s347 = scalar_lea.vmem [#allocation7], %s346
          %348 = dma.done %s344, 128
        $region52: #{tpu_custom_call.1} parent=47 // pred_fallthru
          _
      $region48: #{tpu_custom_call.1} parent=5 // pred_fallthru
        _
    $region6: #{tpu_custom_call.1} parent=1 // loop_footer
      %s20 = sadd.s32 1, %s16
    $region7: #{tpu_custom_call.1} parent=1 // loop_footer_branch
      %15 = sbr.rel target = $region3
    $region8: #{tpu_custom_call.1} parent=1 // loop_exit
      _
    %349 = vsyncpa [#allocation3], 1
    %s350 = scalar_lea.sflag [#allocation3], 1
    %351 = vsyncpa %s350, 1
    %352 = vsyncpa [#allocation6], 1
    %353 = vsyncpa [#allocation4], 1
    %s354 = scalar_lea.sflag [#allocation4], 1
    %355 = vsyncpa %s354, 1

</llo_original>
